<compile_context>
chip_gen: v6e
topology: v6e:2x2x1
jax: 0.10.0
libtpu: 0.0.40
codegen_flags: <defaults>
</compile_context>

<pallas_src>
import math
from functools import partial

import jax
import jax.numpy as jnp
from jax.experimental import pallas as pl
from jax.experimental.pallas import tpu as pltpu

EPS = 1e-5          # nn.GroupNorm default eps
KH = KW = 4
STRIDE = 2
PAD = 1
_INV_SQRT2 = 1.0 / math.sqrt(2.0)


def _round_up(x, m):
    return ((x + m - 1) // m) * m


def encoder_kernel(x_ref, w_ref, params_ref, gmat_ref, mask_ref, o_ref, *,
                   wp2, slab_pad):
    # x_ref:      (NB, 4*C_in, LP)    sublane-dense stride-2 phase planes
    # w_ref:      (4, C_out, 4*C_in)  quadrant-packed conv weights (K = 4*C_in)
    # params_ref: (C_out, 3)          columns = [bias, gamma, beta]
    # gmat_ref:   (C_out, C_out)      group indicator pre-scaled by 1/(cpg*HWout)
    # mask_ref:   (1, SLAB_PAD)       1.0 on valid output columns
    # o_ref:      (NB, C_out, SLAB_PAD)  lane-dense (128-multiple) output slab
    nb = o_ref.shape[0]

    m = mask_ref[...]                              # (1, SLAB_PAD)
    prm = params_ref[...]                          # (C_out, 3)
    bias, gamma, beta = prm[:, 0:1], prm[:, 1:2], prm[:, 2:3]
    gmat = gmat_ref[...]                           # (C_out, C_out), pre-scaled

    # Static quadrant offsets inside a phase plane: (qi, qj) -> qi*wp2 + qj.
    offs = (0, 1, wp2, wp2 + 1)

    for b in range(nb):                            # nb is static -> unrolled
        xb = x_ref[b]                              # (4*C_in, LP) f32

        # Convolution as 4 packed matmuls; acc starts from the first dot.
        acc = jnp.dot(w_ref[0], xb[:, offs[0]:offs[0] + slab_pad],
                      preferred_element_type=jnp.float32)
        for qd in range(1, 4):
            acc += jnp.dot(w_ref[qd], xb[:, offs[qd]:offs[qd] + slab_pad],
                           preferred_element_type=jnp.float32)
        y = acc + bias                             # (C_out, SLAB_PAD)

        # GroupNorm statistics over valid columns only (mask kills the padded
        # W_out+1-th column of each output row and the lane padding).
        ym = y * m
        s = jnp.sum(ym, axis=1, keepdims=True)     # (C_out, 1)  sum y
        ss = jnp.sum(ym * y, axis=1, keepdims=True)  # (C_out, 1)  sum y^2

        # Pre-scaled group matmuls emit per-channel (already broadcast) moments;
        # no concatenate, no result slicing, no broadcast-back relayout.
        mean = jnp.dot(gmat, s, preferred_element_type=jnp.float32)   # E[y]
        ey2 = jnp.dot(gmat, ss, preferred_element_type=jnp.float32)   # E[y^2]
        var = ey2 - mean * mean                    # biased variance (torch GN)
        inv = jax.lax.rsqrt(var + EPS)

        # Fused normalize + affine: z = y*scale + shift.
        scale = inv * gamma
        shift = beta - mean * scale
        z = y * scale + shift

        # Exact (erf) GELU, matching nn.GELU(approximate='none').
        out = 0.5 * z * (1.0 + jax.lax.erf(z * _INV_SQRT2))
        o_ref[b] = out.astype(o_ref.dtype)


def _pick_batch_block(n):
    """Samples per grid step: amortize the per-step overhead on single-TC chips
    (v5e/v6e) while keeping >= 2 parallel grid steps for v7x's two cores."""
    nb = 1
    for cand in range(1, min(n, 8) + 1):
        if n % cand == 0 and n // cand >= 2:
            nb = cand
    return nb


@partial(jax.jit, static_argnames=("group_num",))
def encoder_modulo(x, weight, bias, gamma, beta, *, group_num):
    """x: (N, C_in, H, W) NCHW float32.  Returns (N, C_out, Hout, Wout)."""
    x = x.astype(jnp.float32)
    n, c_in, h, w = x.shape
    c_out = weight.shape[0]
    assert c_out % group_num == 0

    hp, wp = h + 2 * PAD, w + 2 * PAD
    assert hp % STRIDE == 0 and wp % STRIDE == 0, "even padded extents expected"
    hp2, wp2 = hp // STRIDE, wp // STRIDE          # phase-plane spatial extents
    hout, wout = hp2 - 1, wp2 - 1                  # conv output extents
    slab = hout * wp2                              # valid output columns per row-slab
    slab_pad = _round_up(slab, 128)                # lane-dense output stores
    flat = hp2 * wp2
    lp = _round_up(slab_pad + wp2 + 1, 128)        # keeps all 4 quadrant slices in bounds
    assert lp >= flat and lp >= slab_pad + wp2 + 1

    nb = _pick_batch_block(n)

    # Stride-2 phase split, stored sublane-dense: xph[n, (2r+s)*C_in + c, u*wp2+v]
    # = xpad[n, c, 2u+r, 2v+s].  Same bytes as the input (plus lane padding).
    xpad = jnp.pad(x, ((0, 0), (0, 0), (PAD, PAD), (PAD, PAD)))
    xph = xpad.reshape(n, c_in, hp2, 2, wp2, 2).transpose(0, 3, 5, 1, 2, 4)
    xph = xph.reshape(n, 4 * c_in, flat)
    xph = jnp.pad(xph, ((0, 0), (0, 0), (0, lp - flat)))

    # Quadrant-packed weights: wq[2*qi+qj, o, (2*r+s)*C_in + c] = W[o, c, 2qi+r, 2qj+s].
    wq = weight.astype(jnp.float32).reshape(c_out, c_in, 2, 2, 2, 2)
    wq = wq.transpose(2, 4, 0, 3, 5, 1).reshape(4, c_out, 4 * c_in)

    # Coalesced per-channel params (one DMA descriptor).
    params = jnp.stack([bias, gamma, beta], axis=1).astype(jnp.float32)  # (C_out, 3)

    # Group indicator pre-scaled by 1/count so the stats matmuls emit means directly.
    cpg = c_out // group_num
    gidx = jnp.arange(c_out) // cpg
    gmat = (gidx[:, None] == gidx[None, :]).astype(jnp.float32)
    gmat = gmat / float(cpg * hout * wout)

    # Valid-column mask over the lane-padded slab.
    col = jnp.arange(slab_pad)
    mask = ((col < slab) & ((col % wp2) != (wp2 - 1))).astype(jnp.float32)[None, :]

    # Only raise the scoped VMEM limit when the blocks actually need it
    # (v5e default is 16 MiB); at these shapes it stays at the default.
    block_bytes = 4 * (2 * nb * 4 * c_in * lp + 2 * nb * c_out * slab_pad
                       + 8 * c_out * slab_pad)
    vmem_limit = _round_up(4 * block_bytes, 1 << 20) if block_bytes > (4 << 20) else None

    out = pl.pallas_call(
        partial(encoder_kernel, wp2=wp2, slab_pad=slab_pad),
        out_shape=jax.ShapeDtypeStruct((n, c_out, slab_pad), jnp.float32),
        grid=(n // nb,),
        in_specs=[
            pl.BlockSpec((nb, 4 * c_in, lp), lambda i: (i, 0, 0)),
            pl.BlockSpec((4, c_out, 4 * c_in), lambda i: (0, 0, 0)),
            pl.BlockSpec((c_out, 3), lambda i: (0, 0)),
            pl.BlockSpec((c_out, c_out), lambda i: (0, 0)),
            pl.BlockSpec((1, slab_pad), lambda i: (0, 0)),
        ],
        out_specs=pl.BlockSpec((nb, c_out, slab_pad), lambda i: (i, 0, 0)),
        compiler_params=pltpu.CompilerParams(
            dimension_semantics=("parallel",),
            vmem_limit_bytes=vmem_limit),
    )(xph, wq, params, gmat, mask)

    # Drop the lane padding and the per-row padding column; layout is already
    # (N, C_out, spatial) -- no transpose needed.
    return out[:, :, :slab].reshape(n, c_out, hout, wp2)[:, :, :, :wout]


def reference(x, weight, bias, gamma, beta, group_num):
    """Pure-JAX reference for correctness checking."""
    y = jax.lax.conv_general_dilated(
        x, weight, window_strides=(2, 2), padding=((1, 1), (1, 1)),
        dimension_numbers=("NCHW", "OIHW", "NCHW"))
    y = y + bias[None, :, None, None]
    n, c, h, w = y.shape
    g = group_num
    yg = y.reshape(n, g, (c // g) * h * w)
    mean = yg.mean(-1, keepdims=True)
    var = yg.var(-1, keepdims=True)
    yn = ((yg - mean) / jnp.sqrt(var + EPS)).reshape(n, c, h, w)
    yn = yn * gamma[None, :, None, None] + beta[None, :, None, None]
    return 0.5 * yn * (1.0 + jax.lax.erf(yn / jnp.sqrt(2.0)))


if __name__ == "__main__":
    # Small shapes consistent with the module: input_dim=4, output_dim=8, group_num=2
    N, C_IN, H, W = 2, 4, 16, 16
    C_OUT, GROUPS = 8, 2

    key = jax.random.PRNGKey(0)
    kx, kw, kb = jax.random.split(key, 3)

    x = jax.random.normal(kx, (N, C_IN, H, W), dtype=jnp.float32)

    # Deterministic synthetic parameters (Conv2d weight OIHW, GroupNorm affine init)
    fan_in = C_IN * KH * KW
    bound = 1.0 / math.sqrt(fan_in)
    weight = jax.random.uniform(kw, (C_OUT, C_IN, KH, KW), jnp.float32, -bound, bound)
    bias = jax.random.uniform(kb, (C_OUT,), jnp.float32, -bound, bound)
    gamma = jnp.ones((C_OUT,), jnp.float32)
    beta = jnp.zeros((C_OUT,), jnp.float32)

    out = jax.block_until_ready(
        encoder_modulo(x, weight, bias, gamma, beta, group_num=GROUPS))
    ref = jax.block_until_ready(reference(x, weight, bias, gamma, beta, GROUPS))

    assert out.shape == (N, C_OUT, 8, 8), out.shape
    assert jnp.allclose(out, ref, atol=2e-3, rtol=2e-3), float(jnp.max(jnp.abs(out - ref)))

    print("KERNEL_OK")
</pallas_src>

<mosaic_0001>
module attributes {stable_mosaic.version = 11 : i64} {
  func.func @encoder_kernel(%arg0: i32, %arg1: memref<1x16x256xf32, #tpu.memory_space<vmem>>, %arg2: memref<4x8x16xf32, #tpu.memory_space<vmem>>, %arg3: memref<8x3xf32, #tpu.memory_space<vmem>>, %arg4: memref<8x8xf32, #tpu.memory_space<vmem>>, %arg5: memref<1x128xf32, #tpu.memory_space<vmem>>, %arg6: memref<1x8x128xf32, #tpu.memory_space<vmem>>) attributes {dimension_semantics = [#tpu.dimension_semantics<parallel>], iteration_bounds = array<i64: 2>, scalar_prefetch = 0 : i64, scratch_operands = 0 : i64, tpu.core_type = #tpu.core_type<tc>, window_params = [{transform_indices = @transform_0, window_bounds = array<i64: 1, 16, 256>}, {pipeline_mode = #tpu.pipeline_mode<synchronous>, transform_indices = @transform_1, window_bounds = array<i64: 4, 8, 16>}, {pipeline_mode = #tpu.pipeline_mode<synchronous>, transform_indices = @transform_2, window_bounds = array<i64: 8, 3>}, {pipeline_mode = #tpu.pipeline_mode<synchronous>, transform_indices = @transform_3, window_bounds = array<i64: 8, 8>}, {pipeline_mode = #tpu.pipeline_mode<synchronous>, transform_indices = @transform_4, window_bounds = array<i64: 1, 128>}, {transform_indices = @transform_5, window_bounds = array<i64: 1, 8, 128>}]} {
    %c0 = arith.constant 0 : index
    %c0_0 = arith.constant 0 : index
    %0 = vector.load %arg5[%c0, %c0_0] : memref<1x128xf32, #tpu.memory_space<vmem>>, vector<1x128xf32>
    %c0_1 = arith.constant 0 : index
    %c0_2 = arith.constant 0 : index
    %1 = vector.load %arg3[%c0_1, %c0_2] : memref<8x3xf32, #tpu.memory_space<vmem>>, vector<8x3xf32>
    %2 = vector.extract_strided_slice %1 {offsets = [0, 0], sizes = [8, 1], strides = [1, 1]} : vector<8x3xf32> to vector<8x1xf32>
    %3 = vector.extract_strided_slice %1 {offsets = [0, 1], sizes = [8, 1], strides = [1, 1]} : vector<8x3xf32> to vector<8x1xf32>
    %4 = vector.extract_strided_slice %1 {offsets = [0, 2], sizes = [8, 1], strides = [1, 1]} : vector<8x3xf32> to vector<8x1xf32>
    %c0_3 = arith.constant 0 : index
    %c0_4 = arith.constant 0 : index
    %5 = vector.load %arg4[%c0_3, %c0_4] : memref<8x8xf32, #tpu.memory_space<vmem>>, vector<8x8xf32>
    %c0_5 = arith.constant 0 : index
    %c0_6 = arith.constant 0 : index
    %c0_7 = arith.constant 0 : index
    %6 = vector.load %arg1[%c0_5, %c0_6, %c0_7] : memref<1x16x256xf32, #tpu.memory_space<vmem>>, vector<1x16x256xf32>
    %7 = vector.shape_cast %6 : vector<1x16x256xf32> to vector<16x256xf32>
    %c0_8 = arith.constant 0 : index
    %c0_9 = arith.constant 0 : index
    %c0_10 = arith.constant 0 : index
    %8 = vector.load %arg2[%c0_8, %c0_9, %c0_10] : memref<4x8x16xf32, #tpu.memory_space<vmem>>, vector<1x8x16xf32>
    %9 = vector.shape_cast %8 : vector<1x8x16xf32> to vector<8x16xf32>
    %10 = vector.extract_strided_slice %7 {offsets = [0, 0], sizes = [16, 128], strides = [1, 1]} : vector<16x256xf32> to vector<16x128xf32>
    %cst = arith.constant dense<0.000000e+00> : vector<8x128xf32>
    %11 = tpu.matmul %9, %10, %cst {dimension_numbers = #tpu.dot_dimension_numbers<[1], [0], [0], [1], [0, 0, 1, 1], [], []>} : vector<8x16xf32>, vector<16x128xf32>, vector<8x128xf32> -> vector<8x128xf32>
    %c1 = arith.constant 1 : index
    %c0_11 = arith.constant 0 : index
    %c0_12 = arith.constant 0 : index
    %12 = vector.load %arg2[%c1, %c0_11, %c0_12] : memref<4x8x16xf32, #tpu.memory_space<vmem>>, vector<1x8x16xf32>
    %13 = vector.shape_cast %12 : vector<1x8x16xf32> to vector<8x16xf32>
    %14 = vector.extract_strided_slice %7 {offsets = [0, 1], sizes = [16, 128], strides = [1, 1]} : vector<16x256xf32> to vector<16x128xf32>
    %cst_13 = arith.constant dense<0.000000e+00> : vector<8x128xf32>
    %15 = tpu.matmul %13, %14, %cst_13 {dimension_numbers = #tpu.dot_dimension_numbers<[1], [0], [0], [1], [0, 0, 1, 1], [], []>} : vector<8x16xf32>, vector<16x128xf32>, vector<8x128xf32> -> vector<8x128xf32>
    %16 = arith.addf %11, %15 : vector<8x128xf32>
    %c2 = arith.constant 2 : index
    %c0_14 = arith.constant 0 : index
    %c0_15 = arith.constant 0 : index
    %17 = vector.load %arg2[%c2, %c0_14, %c0_15] : memref<4x8x16xf32, #tpu.memory_space<vmem>>, vector<1x8x16xf32>
    %18 = vector.shape_cast %17 : vector<1x8x16xf32> to vector<8x16xf32>
    %19 = vector.extract_strided_slice %7 {offsets = [0, 9], sizes = [16, 128], strides = [1, 1]} : vector<16x256xf32> to vector<16x128xf32>
    %cst_16 = arith.constant dense<0.000000e+00> : vector<8x128xf32>
    %20 = tpu.matmul %18, %19, %cst_16 {dimension_numbers = #tpu.dot_dimension_numbers<[1], [0], [0], [1], [0, 0, 1, 1], [], []>} : vector<8x16xf32>, vector<16x128xf32>, vector<8x128xf32> -> vector<8x128xf32>
    %21 = arith.addf %16, %20 : vector<8x128xf32>
    %c3 = arith.constant 3 : index
    %c0_17 = arith.constant 0 : index
    %c0_18 = arith.constant 0 : index
    %22 = vector.load %arg2[%c3, %c0_17, %c0_18] : memref<4x8x16xf32, #tpu.memory_space<vmem>>, vector<1x8x16xf32>
    %23 = vector.shape_cast %22 : vector<1x8x16xf32> to vector<8x16xf32>
    %24 = vector.extract_strided_slice %7 {offsets = [0, 10], sizes = [16, 128], strides = [1, 1]} : vector<16x256xf32> to vector<16x128xf32>
    %cst_19 = arith.constant dense<0.000000e+00> : vector<8x128xf32>
    %25 = tpu.matmul %23, %24, %cst_19 {dimension_numbers = #tpu.dot_dimension_numbers<[1], [0], [0], [1], [0, 0, 1, 1], [], []>} : vector<8x16xf32>, vector<16x128xf32>, vector<8x128xf32> -> vector<8x128xf32>
    %26 = arith.addf %21, %25 : vector<8x128xf32>
    %27 = vector.broadcast %2 : vector<8x1xf32> to vector<8x128xf32>
    %28 = arith.addf %26, %27 : vector<8x128xf32>
    %29 = vector.broadcast %0 : vector<1x128xf32> to vector<8x128xf32>
    %30 = arith.mulf %28, %29 : vector<8x128xf32>
    %cst_20 = arith.constant dense<0.000000e+00> : vector<8xf32>
    %31 = vector.multi_reduction <add>, %30, %cst_20 [1] : vector<8x128xf32> to vector<8xf32>
    %32 = vector.shape_cast %31 : vector<8xf32> to vector<8x1xf32>
    %33 = arith.mulf %30, %28 : vector<8x128xf32>
    %cst_21 = arith.constant dense<0.000000e+00> : vector<8xf32>
    %34 = vector.multi_reduction <add>, %33, %cst_21 [1] : vector<8x128xf32> to vector<8xf32>
    %35 = vector.shape_cast %34 : vector<8xf32> to vector<8x1xf32>
    %cst_22 = arith.constant dense<0.000000e+00> : vector<8x1xf32>
    %36 = tpu.matmul %5, %32, %cst_22 {dimension_numbers = #tpu.dot_dimension_numbers<[1], [0], [0], [1], [0, 0, 1, 1], [], []>} : vector<8x8xf32>, vector<8x1xf32>, vector<8x1xf32> -> vector<8x1xf32>
    %cst_23 = arith.constant dense<0.000000e+00> : vector<8x1xf32>
    %37 = tpu.matmul %5, %35, %cst_23 {dimension_numbers = #tpu.dot_dimension_numbers<[1], [0], [0], [1], [0, 0, 1, 1], [], []>} : vector<8x8xf32>, vector<8x1xf32>, vector<8x1xf32> -> vector<8x1xf32>
    %38 = arith.mulf %36, %36 : vector<8x1xf32>
    %39 = arith.subf %37, %38 : vector<8x1xf32>
    %cst_24 = arith.constant 9.99999974E-6 : f32
    %40 = vector.broadcast %cst_24 : f32 to vector<8x1xf32>
    %41 = arith.addf %39, %40 : vector<8x1xf32>
    %42 = math.rsqrt %41 : vector<8x1xf32>
    %43 = arith.mulf %42, %3 : vector<8x1xf32>
    %44 = arith.mulf %36, %43 : vector<8x1xf32>
    %45 = arith.subf %4, %44 : vector<8x1xf32>
    %46 = vector.broadcast %43 : vector<8x1xf32> to vector<8x128xf32>
    %47 = arith.mulf %28, %46 : vector<8x128xf32>
    %48 = vector.broadcast %45 : vector<8x1xf32> to vector<8x128xf32>
    %49 = arith.addf %47, %48 : vector<8x128xf32>
    %cst_25 = arith.constant 5.000000e-01 : f32
    %50 = vector.broadcast %cst_25 : f32 to vector<8x128xf32>
    %51 = arith.mulf %50, %49 : vector<8x128xf32>
    %cst_26 = arith.constant 0.707106769 : f32
    %52 = vector.broadcast %cst_26 : f32 to vector<8x128xf32>
    %53 = arith.mulf %49, %52 : vector<8x128xf32>
    %54 = math.erf %53 : vector<8x128xf32>
    %cst_27 = arith.constant 1.000000e+00 : f32
    %55 = vector.broadcast %cst_27 : f32 to vector<8x128xf32>
    %56 = arith.addf %55, %54 : vector<8x128xf32>
    %57 = arith.mulf %51, %56 : vector<8x128xf32>
    %c0_28 = arith.constant 0 : index
    %c0_29 = arith.constant 0 : index
    %c0_30 = arith.constant 0 : index
    %58 = vector.load %arg6[%c0_28, %c0_29, %c0_30] : memref<1x8x128xf32, #tpu.memory_space<vmem>>, vector<1x8x128xf32>
    %59 = vector.shape_cast %58 : vector<1x8x128xf32> to vector<8x128xf32>
    %60 = vector.shape_cast %57 : vector<8x128xf32> to vector<1x8x128xf32>
    tpu.vector_store %arg6[%c0_28, %c0_29, %c0_30], %60 {strides = array<i32>} : memref<1x8x128xf32, #tpu.memory_space<vmem>>, vector<1x8x128xf32>,
    return
  }
  func.func @transform_0(%arg0: i32) -> (i32, i32, i32) {
    %c0_i32 = arith.constant 0 : i32
    %c0_i32_0 = arith.constant 0 : i32
    %c0_i32_1 = arith.constant 0 : i32
    return %arg0, %c0_i32, %c0_i32_0 : i32, i32, i32
  }
  func.func @transform_1(%arg0: i32) -> (i32, i32, i32) {
    %c0_i32 = arith.constant 0 : i32
    %c0_i32_0 = arith.constant 0 : i32
    %c0_i32_1 = arith.constant 0 : i32
    %c0_i32_2 = arith.constant 0 : i32
    return %c0_i32, %c0_i32_0, %c0_i32_1 : i32, i32, i32
  }
  func.func @transform_2(%arg0: i32) -> (i32, i32) {
    %c0_i32 = arith.constant 0 : i32
    %c0_i32_0 = arith.constant 0 : i32
    %c0_i32_1 = arith.constant 0 : i32
    return %c0_i32, %c0_i32_0 : i32, i32
  }
  func.func @transform_3(%arg0: i32) -> (i32, i32) {
    %c0_i32 = arith.constant 0 : i32
    %c0_i32_0 = arith.constant 0 : i32
    %c0_i32_1 = arith.constant 0 : i32
    return %c0_i32, %c0_i32_0 : i32, i32
  }
  func.func @transform_4(%arg0: i32) -> (i32, i32) {
    %c0_i32 = arith.constant 0 : i32
    %c0_i32_0 = arith.constant 0 : i32
    %c0_i32_1 = arith.constant 0 : i32
    return %c0_i32, %c0_i32_0 : i32, i32
  }
  func.func @transform_5(%arg0: i32) -> (i32, i32, i32) {
    %c0_i32 = arith.constant 0 : i32
    %c0_i32_0 = arith.constant 0 : i32
    %c0_i32_1 = arith.constant 0 : i32
    return %arg0, %c0_i32, %c0_i32_0 : i32, i32, i32
  }
}

</mosaic_0001>

<llo_original>
// kernel: encoder_modulo.1
$region0: #{encoder_modulo.1}
  #allocation0 [shape = 'u32[]', space=smem, size = 0x4, offset = 0x4, fixed_abs, tag = 'smem constant byte address 0x4 - core index']
  #allocation1 [shape = 'u32[144,128]{1,0:T(1,128)}', space=vmem, size = 0x12000, scoped, tag = 'internal scratch']
  %s0 = inlined_call_operand.vmem [shape: f32[2,16,256], index: 0, kind: input, shape index: {}]
  %s1 = inlined_call_operand.vmem [shape: f32[4,8,16], index: 1, kind: input, shape index: {}]
  %s2 = inlined_call_operand.vmem [shape: f32[8,3], index: 2, kind: input, shape index: {}]
  %s3 = inlined_call_operand.vmem [shape: f32[8,8], index: 3, kind: input, shape index: {}]
  %s4 = inlined_call_operand.vmem [shape: f32[1,128], index: 4, kind: input, shape index: {}]
  %s5 = inlined_call_operand.vmem [shape: f32[2,8,128], index: 5, kind: output, shape index: {}]
  %s6 = sld [smem:[#allocation0]]
  $region53: #{encoder_modulo.1} parent=0
    _
  %s8 = ssub.s32 1, %s6
  %s9 = scalar_select 0, %s8, %s6
  loop: start=0, step=1, limit=4
  $region2: #{encoder_modulo.1} parent=0 // loop_pre_header
    _
  $region3: #{encoder_modulo.1} parent=0 // loop_header
    %s11 = sphi 0, %s15
    %p12 = scmp.ge.s32.totalorder %s11, 4
    %s21 = sphi 0, %s23
    %s24 = sphi 0, %s21
    %s25 = sphi 0, %s24
    %s41 = sphi 0, %s25
    %s45 = sphi 0, %s45
    %s47 = sphi 0, %s45
    %s48 = sphi 0, %s47
    %s62 = sphi 0, %s48
    %s66 = sphi 0, %s66
    %s68 = sphi 0, %s66
    %s69 = sphi 0, %s68
    %s83 = sphi 0, %s69
    %s87 = sphi 0, %s87
    %s89 = sphi 0, %s87
    %s90 = sphi 0, %s89
    %s104 = sphi 0, %s90
    %s108 = sphi 0, %s108
    %s110 = sphi 0, %s108
    %s111 = sphi 0, %s110
    %s125 = sphi 0, %s111
    %s131 = sphi 0, %s133
    %s134 = sphi 0, %s131
    %s135 = sphi 0, %s134
    %s151 = sphi 0, %s135
  $region4: #{encoder_modulo.1} parent=0 // loop_header_branch
    %14 = sbr.rel (%p12) target = $region8
  $region5: #{encoder_modulo.1} parent=0 // loop_body
    %s16 = ssub.s32 %s11, 1
    %s17 = ssub.s32 %s11, 2
    %s18 = sadd.s32 %s11, 1
    %s19 = ssub.s32 %s11, %s18
    %p20 = scmp.eq.s32.totalorder %s19, 0
    %s22 = sadd.s32 %s21, 1
    %s23 = scalar_select %p20, %s21, %s22
    %p26 = pneg %p20
    %p27 = scmp.eq.s32.totalorder %s11, 1
    %p28 = por %p26, %p27
    %p29 = scmp.ne.s32.totalorder %s21, %s24
    %p30 = scmp.eq.s32.totalorder %s11, 0
    %p31 = por %p29, %p30
    %p32 = scmp.ne.s32.totalorder %s21, %s24
    %p33 = scmp.eq.s32.totalorder %s16, 1
    %p34 = por %p32, %p33
    %p35 = scmp.ne.s32.totalorder %s24, %s25
    %p36 = scmp.eq.s32.totalorder %s16, 0
    %p37 = por %p35, %p36
    %p38 = scmp.ne.s32.totalorder %s24, %s25
    %p39 = scmp.eq.s32.totalorder %s17, 1
    %p40 = por %p38, %p39
    %p42 = scmp.ne.s32.totalorder %s25, %s41
    %p43 = scmp.eq.s32.totalorder %s17, 0
    %p44 = por %p42, %p43
    %s46 = sadd.s32 %s45, 1
    %p49 = scmp.eq.s32.totalorder %s11, 1
    %p50 = scmp.ne.s32.totalorder %s45, %s47
    %p51 = scmp.eq.s32.totalorder %s11, 0
    %p52 = por %p50, %p51
    %p53 = scmp.ne.s32.totalorder %s45, %s47
    %p54 = scmp.eq.s32.totalorder %s16, 1
    %p55 = por %p53, %p54
    %p56 = scmp.ne.s32.totalorder %s47, %s48
    %p57 = scmp.eq.s32.totalorder %s16, 0
    %p58 = por %p56, %p57
    %p59 = scmp.ne.s32.totalorder %s47, %s48
    %p60 = scmp.eq.s32.totalorder %s17, 1
    %p61 = por %p59, %p60
    %p63 = scmp.ne.s32.totalorder %s48, %s62
    %p64 = scmp.eq.s32.totalorder %s17, 0
    %p65 = por %p63, %p64
    %s67 = sadd.s32 %s66, 1
    %p70 = scmp.eq.s32.totalorder %s11, 1
    %p71 = scmp.ne.s32.totalorder %s66, %s68
    %p72 = scmp.eq.s32.totalorder %s11, 0
    %p73 = por %p71, %p72
    %p74 = scmp.ne.s32.totalorder %s66, %s68
    %p75 = scmp.eq.s32.totalorder %s16, 1
    %p76 = por %p74, %p75
    %p77 = scmp.ne.s32.totalorder %s68, %s69
    %p78 = scmp.eq.s32.totalorder %s16, 0
    %p79 = por %p77, %p78
    %p80 = scmp.ne.s32.totalorder %s68, %s69
    %p81 = scmp.eq.s32.totalorder %s17, 1
    %p82 = por %p80, %p81
    %p84 = scmp.ne.s32.totalorder %s69, %s83
    %p85 = scmp.eq.s32.totalorder %s17, 0
    %p86 = por %p84, %p85
    %s88 = sadd.s32 %s87, 1
    %p91 = scmp.eq.s32.totalorder %s11, 1
    %p92 = scmp.ne.s32.totalorder %s87, %s89
    %p93 = scmp.eq.s32.totalorder %s11, 0
    %p94 = por %p92, %p93
    %p95 = scmp.ne.s32.totalorder %s87, %s89
    %p96 = scmp.eq.s32.totalorder %s16, 1
    %p97 = por %p95, %p96
    %p98 = scmp.ne.s32.totalorder %s89, %s90
    %p99 = scmp.eq.s32.totalorder %s16, 0
    %p100 = por %p98, %p99
    %p101 = scmp.ne.s32.totalorder %s89, %s90
    %p102 = scmp.eq.s32.totalorder %s17, 1
    %p103 = por %p101, %p102
    %p105 = scmp.ne.s32.totalorder %s90, %s104
    %p106 = scmp.eq.s32.totalorder %s17, 0
    %p107 = por %p105, %p106
    %s109 = sadd.s32 %s108, 1
    %p112 = scmp.eq.s32.totalorder %s11, 1
    %p113 = scmp.ne.s32.totalorder %s108, %s110
    %p114 = scmp.eq.s32.totalorder %s11, 0
    %p115 = por %p113, %p114
    %p116 = scmp.ne.s32.totalorder %s108, %s110
    %p117 = scmp.eq.s32.totalorder %s16, 1
    %p118 = por %p116, %p117
    %p119 = scmp.ne.s32.totalorder %s110, %s111
    %p120 = scmp.eq.s32.totalorder %s16, 0
    %p121 = por %p119, %p120
    %p122 = scmp.ne.s32.totalorder %s110, %s111
    %p123 = scmp.eq.s32.totalorder %s17, 1
    %p124 = por %p122, %p123
    %p126 = scmp.ne.s32.totalorder %s111, %s125
    %p127 = scmp.eq.s32.totalorder %s17, 0
    %p128 = por %p126, %p127
    %s129 = ssub.s32 %s11, %s18
    %p130 = scmp.eq.s32.totalorder %s129, 0
    %s132 = sadd.s32 %s131, 1
    %s133 = scalar_select %p130, %s131, %s132
    %p136 = pneg %p130
    %p137 = scmp.eq.s32.totalorder %s11, 1
    %p138 = por %p136, %p137
    %p139 = scmp.ne.s32.totalorder %s131, %s134
    %p140 = scmp.eq.s32.totalorder %s11, 0
    %p141 = por %p139, %p140
    %p142 = scmp.ne.s32.totalorder %s131, %s134
    %p143 = scmp.eq.s32.totalorder %s16, 1
    %p144 = por %p142, %p143
    %p145 = scmp.ne.s32.totalorder %s134, %s135
    %p146 = scmp.eq.s32.totalorder %s16, 0
    %p147 = por %p145, %p146
    %p148 = scmp.ne.s32.totalorder %s134, %s135
    %p149 = scmp.eq.s32.totalorder %s17, 1
    %p150 = por %p148, %p149
    %p152 = scmp.ne.s32.totalorder %s135, %s151
    %p153 = scmp.eq.s32.totalorder %s17, 0
    %p154 = por %p152, %p153
    %p155 = scmp.le.s32.totalorder 1, %s11
    %p156 = scmp.lt.s32.totalorder %s11, 3
    %p157 = pnand %p155, %p156
    %p158 = pneg %p157
    // Predicated region
    $region9: #{encoder_modulo.1} parent=5 // pred_check
      _
    $region10: #{encoder_modulo.1} parent=5 // pred_check_branch
      %160 = sbr.rel (%p157) target = $region12
    $region11: #{encoder_modulo.1} parent=5 // pred_region
      %s161 = ssub.s32 %s11, 1
      // Predicated region
      $region13: #{encoder_modulo.1} parent=11 // pred_check
        %p162 = pneg %p58
      $region14: #{encoder_modulo.1} parent=11 // pred_check_branch
        %164 = sbr.rel (%p162) target = $region16
      $region15: #{encoder_modulo.1} parent=11 // pred_region
        _
      $region16: #{encoder_modulo.1} parent=11 // pred_fallthru
        _
      // Predicated region
      $region17: #{encoder_modulo.1} parent=11 // pred_check
        %p165 = pneg %p79
      $region18: #{encoder_modulo.1} parent=11 // pred_check_branch
        %167 = sbr.rel (%p165) target = $region20
      $region19: #{encoder_modulo.1} parent=11 // pred_region
        _
      $region20: #{encoder_modulo.1} parent=11 // pred_fallthru
        _
      // Predicated region
      $region21: #{encoder_modulo.1} parent=11 // pred_check
        %p168 = pneg %p100
      $region22: #{encoder_modulo.1} parent=11 // pred_check_branch
        %170 = sbr.rel (%p168) target = $region24
      $region23: #{encoder_modulo.1} parent=11 // pred_region
        _
      $region24: #{encoder_modulo.1} parent=11 // pred_fallthru
        _
      // Predicated region
      $region25: #{encoder_modulo.1} parent=11 // pred_check
        %p171 = pneg %p121
      $region26: #{encoder_modulo.1} parent=11 // pred_check_branch
        %173 = sbr.rel (%p171) target = $region28
      $region27: #{encoder_modulo.1} parent=11 // pred_region
        _
      $region28: #{encoder_modulo.1} parent=11 // pred_fallthru
        _
    $region12: #{encoder_modulo.1} parent=5 // pred_fallthru
      _
    %p174 = scmp.lt.s32.totalorder %s11, 2
    // Predicated region
    $region29: #{encoder_modulo.1} parent=5 // pred_check
      %p175 = pneg %p174
    $region30: #{encoder_modulo.1} parent=5 // pred_check_branch
      %177 = sbr.rel (%p175) target = $region32
    $region31: #{encoder_modulo.1} parent=5 // pred_region
      // Predicated region
      $region33: #{encoder_modulo.1} parent=31 // pred_check
        %p178 = pneg %p31
      $region34: #{encoder_modulo.1} parent=31 // pred_check_branch
        %180 = sbr.rel (%p178) target = $region36
      $region35: #{encoder_modulo.1} parent=31 // pred_region
        %p181 = scmp.lt.s32.totalorder %s11, 1
        %s182 = scalar_select %p181, %s11, 1
        %s183 = smul.addr %s182, 4
        %s184 = smul.addr %s183, 8
        %s185 = scalar_lea.vmem %s0, %s184
      $region36: #{encoder_modulo.1} parent=31 // pred_fallthru
        _
    $region32: #{encoder_modulo.1} parent=5 // pred_fallthru
      _
    %p186 = scmp.le.s32.totalorder 1, %s11
    %p187 = scmp.lt.s32.totalorder %s11, 3
    %p188 = pnand %p186, %p187
    %p189 = pneg %p188
    // Predicated region
    $region37: #{encoder_modulo.1} parent=5 // pred_check
      _
    $region38: #{encoder_modulo.1} parent=5 // pred_check_branch
      %191 = sbr.rel (%p188) target = $region40
    $region39: #{encoder_modulo.1} parent=5 // pred_region
      %s192 = ssub.s32 %s11, 1
      %p193 = scmp.lt.s32.totalorder %s16, 1
      %s194 = scalar_select %p193, %s16, 1
      %s195 = smul.addr %s194, 4
      %s196 = smul.addr %s195, 8
      %s197 = scalar_lea.vmem %s0, %s196
      %p198 = pneg %p37
      %p199 = pneg %p34
      %p200 = pneg %p58
      %p201 = pneg %p55
      %p202 = pneg %p79
      %p203 = pneg %p76
      %p204 = pneg %p100
      %p205 = pneg %p97
      %p206 = pneg %p121
      %p207 = pneg %p118
      %p208 = pneg %p147
      %p209 = pneg %p144
      %p210 = scmp.lt.s32.totalorder %s16, 1
      %s211 = scalar_select %p210, %s16, 1
      %s212 = smul.addr %s211, 8
      %s213 = scalar_lea.vmem %s5, %s212
      %p214 = scmp.lt.s32.totalorder %s16, 1
      %s215 = scalar_select %p214, %s16, 1
      %s216 = smul.addr %s215, 4
      %s217 = smul.addr %s216, 8
      %s218 = scalar_lea.vmem %s0, %s217
      %p219 = scmp.lt.s32.totalorder %s16, 1
      %s220 = scalar_select %p219, %s16, 1
      %s221 = smul.addr %s220, 8
      %s222 = scalar_lea.vmem %s5, %s221
      %v223 = vld [vmem:[%s4] sm:$0x1]
      %v224 = vld [vmem:[%s2] sm:$0xff]
      %v225 = vld [vmem:[%s3] sm:$0xff]
      %v226 = vld [vmem:[%s218] sm:$0xff]
      %v227 = vld [vmem:[%s218 + $0x8] sm:$0xff]
      %v228 = vld [vmem:[%s218 + $0x10] sm:$0xff]
      %v229 = vld [vmem:[%s218 + $0x18] sm:$0xff]
      %v230 = vld [vmem:[%s1] sm:$0xff]
      %s231 = scalar_lea.vmem %s1, 8
      %v232 = vld [vmem:[%s231] sm:$0xff]
      %237 = vrot.lane.b32.xlu0 %v226, 127
      %v238 = vpop.permute.xlu0 %237
      %239 = vrot.lane.b32.xlu0 %v227, 127
      %v240 = vpop.permute.xlu0 %239
      %241 = vrot.lane.b32.xlu0 %v228, 127
      %v242 = vpop.permute.xlu0 %241
      %243 = vrot.lane.b32.xlu0 %v229, 127
      %v244 = vpop.permute.xlu0 %243
      %vm245 = vcmask 1039360
      %v246 = vsel %vm245, %v238, %v240
      %v247 = vsel %vm245, %v242, %v244
      %vm250 = vcmask 130048
      %v252 = vsel %vm250, %v232, 0
      %254 = vmatprep.subr.mxu0 0.0
      %255 = vmatpush1.msra.mxu0 0.0
      %256 = vmatprep.subr.mxu0 0.0
      %257 = vmatpush1.msra.mxu0 0.0
      %258 = vmatprep.subr.mxu0 0.0
      %259 = vmatpush1.msra.mxu0 0.0
      %260 = vmatprep.subr.mxu0 0.0
      %261 = vmatpush1.msra.mxu0 0.0
      %262 = vmatprep.subr.mxu0 0.0
      %263 = vmatpush1.msra.mxu0 0.0
      %264 = vmatprep.subr.mxu0 0.0
      %265 = vmatpush1.msra.mxu0 0.0
      %266 = vmatprep.subr.mxu0 0.0
      %267 = vmatpush1.msra.mxu0 0.0
      %268 = vmatprep.subr.mxu0 0.0
      %269 = vmatpush1.msra.mxu0 0.0
      %270 = vmatprep.subr.mxu0 0.0
      %271 = vmatpush1.msra.mxu0 0.0
      %272 = vmatprep.subr.mxu0 0.0
      %273 = vmatpush1.msra.mxu0 0.0
      %274 = vmatprep.subr.mxu0 0.0
      %275 = vmatpush1.msra.mxu0 0.0
      %276 = vmatprep.subr.mxu0 0.0
      %277 = vmatpush1.msra.mxu0 0.0
      %278 = vmatprep.subr.mxu0 0.0
      %279 = vmatpush1.msra.mxu0 0.0
      %280 = vmatprep.subr.mxu0 0.0
      %281 = vmatpush1.msra.mxu0 0.0
      %282 = vmatprep.subr.mxu0 0.0
      %283 = vmatpush1.msra.mxu0 %v247
      %284 = vmatprep.subr.mxu0 0.0
      %285 = vmatpush1.msra.mxu0 %v246
      %286 = vmatprep.subr.mxu0 0.0
      %287 = vmatpush2.msra.mxu0 0.0
      %288 = vmatprep.subr.mxu0 0.0
      %289 = vmatpush2.msra.mxu0 0.0
      %290 = vmatprep.subr.mxu0 0.0
      %291 = vmatpush2.msra.mxu0 0.0
      %292 = vmatprep.subr.mxu0 0.0
      %293 = vmatpush2.msra.mxu0 0.0
      %294 = vmatprep.subr.mxu0 0.0
      %295 = vmatpush2.msra.mxu0 0.0
      %296 = vmatprep.subr.mxu0 0.0
      %297 = vmatpush2.msra.mxu0 0.0
      %298 = vmatprep.subr.mxu0 0.0
      %299 = vmatpush2.msra.mxu0 0.0
      %300 = vmatprep.subr.mxu0 0.0
      %301 = vmatpush2.msra.mxu0 0.0
      %302 = vmatprep.subr.mxu0 0.0
      %303 = vmatpush2.msra.mxu0 0.0
      %304 = vmatprep.subr.mxu0 0.0
      %305 = vmatpush2.msra.mxu0 0.0
      %306 = vmatprep.subr.mxu0 0.0
      %307 = vmatpush2.msra.mxu0 0.0
      %308 = vmatprep.subr.mxu0 0.0
      %309 = vmatpush2.msra.mxu0 0.0
      %310 = vmatprep.subr.mxu0 0.0
      %311 = vmatpush2.msra.mxu0 0.0
      %312 = vmatprep.subr.mxu0 0.0
      %313 = vmatpush2.msra.mxu0 0.0
      %314 = vmatprep.subr.mxu0 0.0
      %315 = vmatpush2.msra.mxu0 0.0
      %316 = vmatprep.subr.mxu0 0.0
      %317 = vmatpush2.msra.mxu0 0.0
      %318 = vmatprep.mubr.f32.mxu0 0.0
      %319 = vmatmul.mubr.f32.gmra.mxu0 %v252
      %v320 = vpop.f32.mrf.mxu0
      %v321 = vadd.f32 0.0, %v320
      %v322 = vpop.f32.mrf.mxu0
      %323 = vdwg.mxu0
      %v325 = vsel %vm250, %v230, 0
      %327 = vmatprep.subr.mxu0 0.0
      %328 = vmatpush1.msra.mxu0 0.0
      %329 = vmatprep.subr.mxu0 0.0
      %330 = vmatpush1.msra.mxu0 0.0
      %331 = vmatprep.subr.mxu0 0.0
      %332 = vmatpush1.msra.mxu0 0.0
      %333 = vmatprep.subr.mxu0 0.0
      %334 = vmatpush1.msra.mxu0 0.0
      %335 = vmatprep.subr.mxu0 0.0
      %336 = vmatpush1.msra.mxu0 0.0
      %337 = vmatprep.subr.mxu0 0.0
      %338 = vmatpush1.msra.mxu0 0.0
      %339 = vmatprep.subr.mxu0 0.0
      %340 = vmatpush1.msra.mxu0 0.0
      %341 = vmatprep.subr.mxu0 0.0
      %342 = vmatpush1.msra.mxu0 0.0
      %343 = vmatprep.subr.mxu0 0.0
      %344 = vmatpush1.msra.mxu0 0.0
      %345 = vmatprep.subr.mxu0 0.0
      %346 = vmatpush1.msra.mxu0 0.0
      %347 = vmatprep.subr.mxu0 0.0
      %348 = vmatpush1.msra.mxu0 0.0
      %349 = vmatprep.subr.mxu0 0.0
      %350 = vmatpush1.msra.mxu0 0.0
      %351 = vmatprep.subr.mxu0 0.0
      %352 = vmatpush1.msra.mxu0 0.0
      %353 = vmatprep.subr.mxu0 0.0
      %354 = vmatpush1.msra.mxu0 0.0
      %355 = vmatprep.subr.mxu0 0.0
      %356 = vmatpush1.msra.mxu0 %v228
      %357 = vmatprep.subr.mxu0 0.0
      %358 = vmatpush1.msra.mxu0 %v226
      %359 = vmatprep.subr.mxu0 0.0
      %360 = vmatpush2.msra.mxu0 0.0
      %361 = vmatprep.subr.mxu0 0.0
      %362 = vmatpush2.msra.mxu0 0.0
      %363 = vmatprep.subr.mxu0 0.0
      %364 = vmatpush2.msra.mxu0 0.0
      %365 = vmatprep.subr.mxu0 0.0
      %366 = vmatpush2.msra.mxu0 0.0
      %367 = vmatprep.subr.mxu0 0.0
      %368 = vmatpush2.msra.mxu0 0.0
      %369 = vmatprep.subr.mxu0 0.0
      %370 = vmatpush2.msra.mxu0 0.0
      %371 = vmatprep.subr.mxu0 0.0
      %372 = vmatpush2.msra.mxu0 0.0
      %373 = vmatprep.subr.mxu0 0.0
      %374 = vmatpush2.msra.mxu0 0.0
      %375 = vmatprep.subr.mxu0 0.0
      %376 = vmatpush2.msra.mxu0 0.0
      %377 = vmatprep.subr.mxu0 0.0
      %378 = vmatpush2.msra.mxu0 0.0
      %379 = vmatprep.subr.mxu0 0.0
      %380 = vmatpush2.msra.mxu0 0.0
      %381 = vmatprep.subr.mxu0 0.0
      %382 = vmatpush2.msra.mxu0 0.0
      %383 = vmatprep.subr.mxu0 0.0
      %384 = vmatpush2.msra.mxu0 0.0
      %385 = vmatprep.subr.mxu0 0.0
      %386 = vmatpush2.msra.mxu0 0.0
      %387 = vmatprep.subr.mxu0 0.0
      %388 = vmatpush2.msra.mxu0 0.0
      %389 = vmatprep.subr.mxu0 0.0
      %390 = vmatpush2.msra.mxu0 0.0
      %391 = vmatprep.mubr.f32.mxu0 0.0
      %392 = vmatmul.mubr.f32.gmra.mxu0 %v325
      %v393 = vpop.f32.mrf.mxu0
      %v394 = vadd.f32 %v321, %v393
      %v395 = vpop.f32.mrf.mxu0
      %396 = vdwg.mxu0
      %s397 = scalar_lea.vmem %s1, 16
      %v398 = vld [vmem:[%s397] sm:$0xff]
      %399 = vrot.lane.b32.xlu0 %v226, 119
      %v400 = vpop.permute.xlu0 %399
      %401 = vrot.lane.b32.xlu0 %v227, 119
      %v402 = vpop.permute.xlu0 %401
      %403 = vrot.lane.b32.xlu0 %v228, 119
      %v404 = vpop.permute.xlu0 %403
      %405 = vrot.lane.b32.xlu0 %v229, 119
      %v406 = vpop.permute.xlu0 %405
      %vm407 = vcmask 973824
      %v408 = vsel %vm407, %v400, %v402
      %v409 = vsel %vm407, %v404, %v406
      %v413 = vsel %vm250, %v398, 0
      %415 = vmatprep.subr.mxu0 0.0
      %416 = vmatpush1.msra.mxu0 0.0
      %417 = vmatprep.subr.mxu0 0.0
      %418 = vmatpush1.msra.mxu0 0.0
      %419 = vmatprep.subr.mxu0 0.0
      %420 = vmatpush1.msra.mxu0 0.0
      %421 = vmatprep.subr.mxu0 0.0
      %422 = vmatpush1.msra.mxu0 0.0
      %423 = vmatprep.subr.mxu0 0.0
      %424 = vmatpush1.msra.mxu0 0.0
      %425 = vmatprep.subr.mxu0 0.0
      %426 = vmatpush1.msra.mxu0 0.0
      %427 = vmatprep.subr.mxu0 0.0
      %428 = vmatpush1.msra.mxu0 0.0
      %429 = vmatprep.subr.mxu0 0.0
      %430 = vmatpush1.msra.mxu0 0.0
      %431 = vmatprep.subr.mxu0 0.0
      %432 = vmatpush1.msra.mxu0 0.0
      %433 = vmatprep.subr.mxu0 0.0
      %434 = vmatpush1.msra.mxu0 0.0
      %435 = vmatprep.subr.mxu0 0.0
      %436 = vmatpush1.msra.mxu0 0.0
      %437 = vmatprep.subr.mxu0 0.0
      %438 = vmatpush1.msra.mxu0 0.0
      %439 = vmatprep.subr.mxu0 0.0
      %440 = vmatpush1.msra.mxu0 0.0
      %441 = vmatprep.subr.mxu0 0.0
      %442 = vmatpush1.msra.mxu0 0.0
      %443 = vmatprep.subr.mxu0 0.0
      %444 = vmatpush1.msra.mxu0 %v409
      %445 = vmatprep.subr.mxu0 0.0
      %446 = vmatpush1.msra.mxu0 %v408
      %447 = vmatprep.subr.mxu0 0.0
      %448 = vmatpush2.msra.mxu0 0.0
      %449 = vmatprep.subr.mxu0 0.0
      %450 = vmatpush2.msra.mxu0 0.0
      %451 = vmatprep.subr.mxu0 0.0
      %452 = vmatpush2.msra.mxu0 0.0
      %453 = vmatprep.subr.mxu0 0.0
      %454 = vmatpush2.msra.mxu0 0.0
      %455 = vmatprep.subr.mxu0 0.0
      %456 = vmatpush2.msra.mxu0 0.0
      %457 = vmatprep.subr.mxu0 0.0
      %458 = vmatpush2.msra.mxu0 0.0
      %459 = vmatprep.subr.mxu0 0.0
      %460 = vmatpush2.msra.mxu0 0.0
      %461 = vmatprep.subr.mxu0 0.0
      %462 = vmatpush2.msra.mxu0 0.0
      %463 = vmatprep.subr.mxu0 0.0
      %464 = vmatpush2.msra.mxu0 0.0
      %465 = vmatprep.subr.mxu0 0.0
      %466 = vmatpush2.msra.mxu0 0.0
      %467 = vmatprep.subr.mxu0 0.0
      %468 = vmatpush2.msra.mxu0 0.0
      %469 = vmatprep.subr.mxu0 0.0
      %470 = vmatpush2.msra.mxu0 0.0
      %471 = vmatprep.subr.mxu0 0.0
      %472 = vmatpush2.msra.mxu0 0.0
      %473 = vmatprep.subr.mxu0 0.0
      %474 = vmatpush2.msra.mxu0 0.0
      %475 = vmatprep.subr.mxu0 0.0
      %476 = vmatpush2.msra.mxu0 0.0
      %477 = vmatprep.subr.mxu0 0.0
      %478 = vmatpush2.msra.mxu0 0.0
      %479 = vmatprep.mubr.f32.mxu0 0.0
      %480 = vmatmul.mubr.f32.gmra.mxu0 %v413
      %v481 = vpop.f32.mrf.mxu0
      %v482 = vadd.f32 0.0, %v481
      %v483 = vpop.f32.mrf.mxu0
      %484 = vdwg.mxu0
      %v485 = vadd.f32 %v394, %v482
      %s486 = scalar_lea.vmem %s1, 24
      %v487 = vld [vmem:[%s486] sm:$0xff]
      %488 = vrot.lane.b32.xlu0 %v226, 118
      %v489 = vpop.permute.xlu0 %488
      %490 = vrot.lane.b32.xlu0 %v227, 118
      %v491 = vpop.permute.xlu0 %490
      %492 = vrot.lane.b32.xlu0 %v228, 118
      %v493 = vpop.permute.xlu0 %492
      %494 = vrot.lane.b32.xlu0 %v229, 118
      %v495 = vpop.permute.xlu0 %494
      %vm496 = vcmask 965632
      %v497 = vsel %vm496, %v489, %v491
      %v498 = vsel %vm496, %v493, %v495
      %v502 = vsel %vm250, %v487, 0
      %504 = vmatprep.subr.mxu0 0.0
      %505 = vmatpush1.msra.mxu0 0.0
      %506 = vmatprep.subr.mxu0 0.0
      %507 = vmatpush1.msra.mxu0 0.0
      %508 = vmatprep.subr.mxu0 0.0
      %509 = vmatpush1.msra.mxu0 0.0
      %510 = vmatprep.subr.mxu0 0.0
      %511 = vmatpush1.msra.mxu0 0.0
      %512 = vmatprep.subr.mxu0 0.0
      %513 = vmatpush1.msra.mxu0 0.0
      %514 = vmatprep.subr.mxu0 0.0
      %515 = vmatpush1.msra.mxu0 0.0
      %516 = vmatprep.subr.mxu0 0.0
      %517 = vmatpush1.msra.mxu0 0.0
      %518 = vmatprep.subr.mxu0 0.0
      %519 = vmatpush1.msra.mxu0 0.0
      %520 = vmatprep.subr.mxu0 0.0
      %521 = vmatpush1.msra.mxu0 0.0
      %522 = vmatprep.subr.mxu0 0.0
      %523 = vmatpush1.msra.mxu0 0.0
      %524 = vmatprep.subr.mxu0 0.0
      %525 = vmatpush1.msra.mxu0 0.0
      %526 = vmatprep.subr.mxu0 0.0
      %527 = vmatpush1.msra.mxu0 0.0
      %528 = vmatprep.subr.mxu0 0.0
      %529 = vmatpush1.msra.mxu0 0.0
      %530 = vmatprep.subr.mxu0 0.0
      %531 = vmatpush1.msra.mxu0 0.0
      %532 = vmatprep.subr.mxu0 0.0
      %533 = vmatpush1.msra.mxu0 %v498
      %534 = vmatprep.subr.mxu0 0.0
      %535 = vmatpush1.msra.mxu0 %v497
      %536 = vmatprep.subr.mxu0 0.0
      %537 = vmatpush2.msra.mxu0 0.0
      %538 = vmatprep.subr.mxu0 0.0
      %539 = vmatpush2.msra.mxu0 0.0
      %540 = vmatprep.subr.mxu0 0.0
      %541 = vmatpush2.msra.mxu0 0.0
      %542 = vmatprep.subr.mxu0 0.0
      %543 = vmatpush2.msra.mxu0 0.0
      %544 = vmatprep.subr.mxu0 0.0
      %545 = vmatpush2.msra.mxu0 0.0
      %546 = vmatprep.subr.mxu0 0.0
      %547 = vmatpush2.msra.mxu0 0.0
      %548 = vmatprep.subr.mxu0 0.0
      %549 = vmatpush2.msra.mxu0 0.0
      %550 = vmatprep.subr.mxu0 0.0
      %551 = vmatpush2.msra.mxu0 0.0
      %552 = vmatprep.subr.mxu0 0.0
      %553 = vmatpush2.msra.mxu0 0.0
      %554 = vmatprep.subr.mxu0 0.0
      %555 = vmatpush2.msra.mxu0 0.0
      %556 = vmatprep.subr.mxu0 0.0
      %557 = vmatpush2.msra.mxu0 0.0
      %558 = vmatprep.subr.mxu0 0.0
      %559 = vmatpush2.msra.mxu0 0.0
      %560 = vmatprep.subr.mxu0 0.0
      %561 = vmatpush2.msra.mxu0 0.0
      %562 = vmatprep.subr.mxu0 0.0
      %563 = vmatpush2.msra.mxu0 0.0
      %564 = vmatprep.subr.mxu0 0.0
      %565 = vmatpush2.msra.mxu0 0.0
      %566 = vmatprep.subr.mxu0 0.0
      %567 = vmatpush2.msra.mxu0 0.0
      %568 = vmatprep.mubr.f32.mxu0 0.0
      %569 = vmatmul.mubr.f32.gmra.mxu0 %v502
      %v570 = vpop.f32.mrf.mxu0
      %v571 = vadd.f32 0.0, %v570
      %v572 = vpop.f32.mrf.mxu0
      %573 = vdwg.mxu0
      %v574 = vadd.f32 %v485, %v571
      %576 = vset.pattern.permute.xlu0 0
      %577 = vperm.xlu0 %576, %v224
      %v578 = vpop.permute.xlu0 %577
      %v580 = vadd.f32 %v574, %v578
      %v582 = vlaneseq
      %v583 = vshrl.u32 %v582, 7
      %v584 = vsub.s32 0, %v583
      %v585 = vrot.slane %v223, %v584
      %v587 = vmul.f32 %v580, %v585
      %588 = vadd.xlane.f32.xlu0 %v587
      %v589 = vpop.xlane.xlu0 %588
      %v590 = vmul.f32 %v587, %v580
      %591 = vadd.xlane.f32.xlu0 %v590
      %v592 = vpop.xlane.xlu0 %591
      %vm593 = vcmask 64512
      %v595 = vsel %vm593, %v225, 0
      %597 = vmatprep.subr.mxu0 0.0
      %598 = vmatpush1.msra.mxu0 0.0
      %599 = vmatprep.subr.mxu0 0.0
      %600 = vmatpush1.msra.mxu0 0.0
      %601 = vmatprep.subr.mxu0 0.0
      %602 = vmatpush1.msra.mxu0 0.0
      %603 = vmatprep.subr.mxu0 0.0
      %604 = vmatpush1.msra.mxu0 0.0
      %605 = vmatprep.subr.mxu0 0.0
      %606 = vmatpush1.msra.mxu0 0.0
      %607 = vmatprep.subr.mxu0 0.0
      %608 = vmatpush1.msra.mxu0 0.0
      %609 = vmatprep.subr.mxu0 0.0
      %610 = vmatpush1.msra.mxu0 0.0
      %611 = vmatprep.subr.mxu0 0.0
      %612 = vmatpush1.msra.mxu0 0.0
      %613 = vmatprep.subr.mxu0 0.0
      %614 = vmatpush1.msra.mxu0 0.0
      %615 = vmatprep.subr.mxu0 0.0
      %616 = vmatpush1.msra.mxu0 0.0
      %617 = vmatprep.subr.mxu0 0.0
      %618 = vmatpush1.msra.mxu0 0.0
      %619 = vmatprep.subr.mxu0 0.0
      %620 = vmatpush1.msra.mxu0 0.0
      %621 = vmatprep.subr.mxu0 0.0
      %622 = vmatpush1.msra.mxu0 0.0
      %623 = vmatprep.subr.mxu0 0.0
      %624 = vmatpush1.msra.mxu0 0.0
      %625 = vmatprep.subr.mxu0 0.0
      %626 = vmatpush1.msra.mxu0 0.0
      %627 = vmatprep.subr.mxu0 0.0
      %628 = vmatpush1.msra.mxu0 %v589
      %629 = vmatprep.subr.mxu0 0.0
      %630 = vmatpush2.msra.mxu0 0.0
      %631 = vmatprep.subr.mxu0 0.0
      %632 = vmatpush2.msra.mxu0 0.0
      %633 = vmatprep.subr.mxu0 0.0
      %634 = vmatpush2.msra.mxu0 0.0
      %635 = vmatprep.subr.mxu0 0.0
      %636 = vmatpush2.msra.mxu0 0.0
      %637 = vmatprep.subr.mxu0 0.0
      %638 = vmatpush2.msra.mxu0 0.0
      %639 = vmatprep.subr.mxu0 0.0
      %640 = vmatpush2.msra.mxu0 0.0
      %641 = vmatprep.subr.mxu0 0.0
      %642 = vmatpush2.msra.mxu0 0.0
      %643 = vmatprep.subr.mxu0 0.0
      %644 = vmatpush2.msra.mxu0 0.0
      %645 = vmatprep.subr.mxu0 0.0
      %646 = vmatpush2.msra.mxu0 0.0
      %647 = vmatprep.subr.mxu0 0.0
      %648 = vmatpush2.msra.mxu0 0.0
      %649 = vmatprep.subr.mxu0 0.0
      %650 = vmatpush2.msra.mxu0 0.0
      %651 = vmatprep.subr.mxu0 0.0
      %652 = vmatpush2.msra.mxu0 0.0
      %653 = vmatprep.subr.mxu0 0.0
      %654 = vmatpush2.msra.mxu0 0.0
      %655 = vmatprep.subr.mxu0 0.0
      %656 = vmatpush2.msra.mxu0 0.0
      %657 = vmatprep.subr.mxu0 0.0
      %658 = vmatpush2.msra.mxu0 0.0
      %659 = vmatprep.subr.mxu0 0.0
      %660 = vmatpush2.msra.mxu0 0.0
      %661 = vmatprep.mubr.f32.mxu0 0.0
      %662 = vmatmul.mubr.f32.gmra.mxu0 %v595
      %v663 = vpop.f32.mrf.mxu0
      %v664 = vadd.f32 0.0, %v663
      %v665 = vpop.f32.mrf.mxu0
      %666 = vdwg.mxu0
      %667 = vmatprep.subr.mxu0 0.0
      %668 = vmatpush1.msra.mxu0 0.0
      %669 = vmatprep.subr.mxu0 0.0
      %670 = vmatpush1.msra.mxu0 0.0
      %671 = vmatprep.subr.mxu0 0.0
      %672 = vmatpush1.msra.mxu0 0.0
      %673 = vmatprep.subr.mxu0 0.0
      %674 = vmatpush1.msra.mxu0 0.0
      %675 = vmatprep.subr.mxu0 0.0
      %676 = vmatpush1.msra.mxu0 0.0
      %677 = vmatprep.subr.mxu0 0.0
      %678 = vmatpush1.msra.mxu0 0.0
      %679 = vmatprep.subr.mxu0 0.0
      %680 = vmatpush1.msra.mxu0 0.0
      %681 = vmatprep.subr.mxu0 0.0
      %682 = vmatpush1.msra.mxu0 0.0
      %683 = vmatprep.subr.mxu0 0.0
      %684 = vmatpush1.msra.mxu0 0.0
      %685 = vmatprep.subr.mxu0 0.0
      %686 = vmatpush1.msra.mxu0 0.0
      %687 = vmatprep.subr.mxu0 0.0
      %688 = vmatpush1.msra.mxu0 0.0
      %689 = vmatprep.subr.mxu0 0.0
      %690 = vmatpush1.msra.mxu0 0.0
      %691 = vmatprep.subr.mxu0 0.0
      %692 = vmatpush1.msra.mxu0 0.0
      %693 = vmatprep.subr.mxu0 0.0
      %694 = vmatpush1.msra.mxu0 0.0
      %695 = vmatprep.subr.mxu0 0.0
      %696 = vmatpush1.msra.mxu0 0.0
      %697 = vmatprep.subr.mxu0 0.0
      %698 = vmatpush1.msra.mxu0 %v592
      %699 = vmatprep.subr.mxu0 0.0
      %700 = vmatpush2.msra.mxu0 0.0
      %701 = vmatprep.subr.mxu0 0.0
      %702 = vmatpush2.msra.mxu0 0.0
      %703 = vmatprep.subr.mxu0 0.0
      %704 = vmatpush2.msra.mxu0 0.0
      %705 = vmatprep.subr.mxu0 0.0
      %706 = vmatpush2.msra.mxu0 0.0
      %707 = vmatprep.subr.mxu0 0.0
      %708 = vmatpush2.msra.mxu0 0.0
      %709 = vmatprep.subr.mxu0 0.0
      %710 = vmatpush2.msra.mxu0 0.0
      %711 = vmatprep.subr.mxu0 0.0
      %712 = vmatpush2.msra.mxu0 0.0
      %713 = vmatprep.subr.mxu0 0.0
      %714 = vmatpush2.msra.mxu0 0.0
      %715 = vmatprep.subr.mxu0 0.0
      %716 = vmatpush2.msra.mxu0 0.0
      %717 = vmatprep.subr.mxu0 0.0
      %718 = vmatpush2.msra.mxu0 0.0
      %719 = vmatprep.subr.mxu0 0.0
      %720 = vmatpush2.msra.mxu0 0.0
      %721 = vmatprep.subr.mxu0 0.0
      %722 = vmatpush2.msra.mxu0 0.0
      %723 = vmatprep.subr.mxu0 0.0
      %724 = vmatpush2.msra.mxu0 0.0
      %725 = vmatprep.subr.mxu0 0.0
      %726 = vmatpush2.msra.mxu0 0.0
      %727 = vmatprep.subr.mxu0 0.0
      %728 = vmatpush2.msra.mxu0 0.0
      %729 = vmatprep.subr.mxu0 0.0
      %730 = vmatpush2.msra.mxu0 0.0
      %731 = vmatprep.mubr.f32.mxu0 0.0
      %732 = vmatmul.mubr.f32.gmra.mxu0 %v595
      %v733 = vpop.f32.mrf.mxu0
      %v734 = vadd.f32 0.0, %v733
      %v735 = vpop.f32.mrf.mxu0
      %736 = vdwg.mxu0
      %v737 = vmul.f32 %v664, %v664
      %v738 = vsub.f32 %v734, %v737
      %v739 = vadd.f32 %v738, 1e-05
      %v740 = vrsqrt.pop %v739
      %741 = vrot.lane.b32.xlu0 %v224, 127
      %v742 = vpop.permute.xlu0 %741
      %v744 = vmul.f32 %v740, %v742
      %v745 = vmul.f32 %v664, %v744
      %747 = vrot.lane.b32.xlu0 %v745, 2
      %v748 = vpop.permute.xlu0 %747
      %v750 = vsub.f32 %v224, %v748
      %752 = vset.pattern.permute.xlu0 0
      %753 = vperm.xlu0 %752, %v744
      %v754 = vpop.permute.xlu0 %753
      %v756 = vmul.f32 %v580, %v754
      %758 = vset.pattern.permute.xlu0 2
      %759 = vperm.xlu0 %758, %v750
      %v760 = vpop.permute.xlu0 %759
      %v762 = vadd.f32 %v756, %v760
      %v763 = vmul.f32 %v762, 0.5
      %v764 = vmul.f32 %v762, 0.70710677
      %v765 = verf.f32.pop %v764
      %v766 = vadd.f32 %v765, 1.0
      %v767 = vmul.f32 %v763, %v766
      %768 = vst [vmem:[%s222] sm:$0xff] %v767
      %p769 = scmp.lt.s32.totalorder %s16, 1
      %s770 = scalar_select %p769, %s16, 1
      %s771 = smul.addr %s770, 8
      %s772 = scalar_lea.vmem %s5, %s771
      // Predicated region
      $region41: #{encoder_modulo.1} parent=39 // pred_check
        %p773 = pneg %p144
      $region42: #{encoder_modulo.1} parent=39 // pred_check_branch
        %775 = sbr.rel (%p773) target = $region44
      $region43: #{encoder_modulo.1} parent=39 // pred_region
        _
      $region44: #{encoder_modulo.1} parent=39 // pred_fallthru
        _
    $region40: #{encoder_modulo.1} parent=5 // pred_fallthru
      _
    %p776 = scmp.le.s32.totalorder 2, %s11
    // Predicated region
    $region45: #{encoder_modulo.1} parent=5 // pred_check
      %p777 = pneg %p776
    $region46: #{encoder_modulo.1} parent=5 // pred_check_branch
      %779 = sbr.rel (%p777) target = $region48
    $region47: #{encoder_modulo.1} parent=5 // pred_region
      %s780 = ssub.s32 %s11, 2
      // Predicated region
      $region49: #{encoder_modulo.1} parent=47 // pred_check
        %p781 = pneg %p150
      $region50: #{encoder_modulo.1} parent=47 // pred_check_branch
        %783 = sbr.rel (%p781) target = $region52
      $region51: #{encoder_modulo.1} parent=47 // pred_region
        %p784 = scmp.lt.s32.totalorder %s17, 1
        %s785 = scalar_select %p784, %s17, 1
        %s786 = smul.addr %s785, 8
        %s787 = scalar_lea.vmem %s5, %s786
      $region52: #{encoder_modulo.1} parent=47 // pred_fallthru
        _
    $region48: #{encoder_modulo.1} parent=5 // pred_fallthru
      _
  $region6: #{encoder_modulo.1} parent=0 // loop_footer
    %s15 = sadd.s32 1, %s11
  $region7: #{encoder_modulo.1} parent=0 // loop_footer_branch
    %10 = sbr.rel target = $region3
  $region8: #{encoder_modulo.1} parent=0 // loop_exit
    _

</llo_original>
